<compile_context>
chip_gen: v7x
topology: tpu7x:2x2x1
jax: 0.10.0
libtpu: 0.0.40
codegen_flags: <defaults>
</compile_context>

<pallas_src>
import numpy as np
import jax
import jax.numpy as jnp
from jax.experimental import pallas as pl
from jax.experimental.pallas import tpu as pltpu

_LANE = 128
_SUBLANE = 8

_BASIS_CACHE = {}


def _dft_basis(n):
    """(cos, -sin) DFT bases, each (n, n) float32. Cached per FFT length."""
    basis = _BASIS_CACHE.get(n)
    if basis is None:
        idx = np.arange(n, dtype=np.int64)
        mod = (idx[:, None] * idx[None, :]) % n            # exact integer math
        ang = (2.0 * np.pi / n) * mod.astype(np.float64)   # (n_in, k_out)
        cos_m = np.cos(ang).astype(np.float32)
        nsin_m = (-np.sin(ang)).astype(np.float32)
        # TODO(synk): bf16 basis (keeping fp32 accumulation) would run the MXU
        # ~4x faster on v6e/v7x for compute-bound n, but needs accuracy
        # re-validation at large n; kept fp32 here.
        basis = (cos_m, nsin_m)
        _BASIS_CACHE[n] = basis
    return basis


def _vmem_capacity_bytes():
    try:
        return int(pltpu.get_tpu_info().vmem_capacity_bytes)
    except Exception:
        return 64 * 1024 * 1024   # conservative fallback (v7x per-TC VMEM)


def _plan_tiles(rows, n, budget):
    """Pick (tm, tn): row tile of x/outputs and column tile of the bases."""
    rows_pad8 = max(_SUBLANE, ((rows + _SUBLANE - 1) // _SUBLANE) * _SUBLANE)

    def basis_bytes(tn):
        # cos + (-sin) tiles; conservatively budget 2 pipeline buffers each
        # even though we request single-buffering (headroom if hint ignored).
        return 2 * 2 * n * tn * 4

    def per_row_bytes(tn):
        # x double-buffered (2*n) + real/imag outputs double-buffered (2*2*tn)
        return 4 * (2 * n + 4 * tn)

    def max_tm(tn):
        rem = budget - basis_bytes(tn)
        return rem // per_row_bytes(tn) if rem > 0 else 0

    if max_tm(n) >= _SUBLANE:
        tn = n                      # whole basis stays VMEM resident
    else:
        # Column-tile the basis: removes the hard n ceiling (v7x 64 MiB VMEM).
        tn = (budget // 2) // (2 * 2 * n * 4)
        tn = max(_LANE, (tn // _LANE) * _LANE)
        tn = min(tn, ((n + _LANE - 1) // _LANE) * _LANE)

    tm = min(max_tm(tn), 2048, rows_pad8)   # big tiles amortize ~0.35us/step
    # Guarantee >= 2 row tiles so v7x's two TensorCores both get work.
    if rows_pad8 >= 2 * _SUBLANE:
        tm = min(tm, rows_pad8 // 2)
    tm = max(_SUBLANE, (tm // _SUBLANE) * _SUBLANE)
    return int(tm), int(tn)


def _dft_kernel(x_ref, cos_ref, nsin_ref, real_ref, imag_ref):
    # x_ref: (TM, n)   cos_ref / nsin_ref: (n, TN)   real_ref / imag_ref: (TM, TN)
    x = x_ref[...]
    real_ref[...] = jnp.dot(x, cos_ref[...], preferred_element_type=jnp.float32)
    imag_ref[...] = jnp.dot(x, nsin_ref[...], preferred_element_type=jnp.float32)


def fft1d_layer(hidden_state):
    """Pallas equivalent of FFT1DLayer.forward. Returns (fft_real, fft_imag)."""
    hidden_state = hidden_state.astype(jnp.float32)  # autocast(enabled=False) => fp32
    orig_shape = hidden_state.shape
    n = int(orig_shape[-1])
    rows = 1
    for d in orig_shape[:-1]:
        rows *= int(d)
    x2d = hidden_state.reshape(rows, n)

    vmem_capacity = _vmem_capacity_bytes()
    budget = int(vmem_capacity * 0.72)        # per-generation budget, not 24 MiB
    tm, tn = _plan_tiles(rows, n, budget)

    num_row_tiles = pl.cdiv(rows, tm)
    num_col_tiles = pl.cdiv(n, tn)
    rows_padded = num_row_tiles * tm
    if rows_padded != rows:
        x2d = jnp.pad(x2d, ((0, rows_padded - rows), (0, 0)))

    cos_np, nsin_np = _dft_basis(n)
    cos_m = jnp.asarray(cos_np)
    nsin_m = jnp.asarray(nsin_np)

    cost = pl.CostEstimate(
        flops=4 * rows_padded * n * n,                # two (TM,n)x(n,TN) dots per tile
        transcendentals=0,
        bytes_accessed=4 * (3 * rows_padded * n + 2 * n * n),
    )
    compiler_params = pltpu.CompilerParams(
        dimension_semantics=("parallel", "arbitrary"),   # rows across TCs, cols inner
        vmem_limit_bytes=int(vmem_capacity * 0.9),       # > v5e's 16 MiB default
    )
    out_shape = (
        jax.ShapeDtypeStruct((rows_padded, n), jnp.float32),
        jax.ShapeDtypeStruct((rows_padded, n), jnp.float32),
    )

    def run(single_buffer_basis):
        basis_kwargs = {}
        if single_buffer_basis and hasattr(pl, "Buffered"):
            # Basis block index never changes with the row axis -> second
            # pipeline buffer is pure VMEM waste.
            basis_kwargs = {"pipeline_mode": pl.Buffered(1)}
        grid_spec = pltpu.PrefetchScalarGridSpec(
            num_scalar_prefetch=0,
            grid=(num_row_tiles, num_col_tiles),
            in_specs=[
                pl.BlockSpec((tm, n), lambda i, j: (i, 0)),           # streamed rows
                pl.BlockSpec((n, tn), lambda i, j: (0, j), **basis_kwargs),  # cos
                pl.BlockSpec((n, tn), lambda i, j: (0, j), **basis_kwargs),  # -sin
            ],
            out_specs=[
                pl.BlockSpec((tm, tn), lambda i, j: (i, j)),
                pl.BlockSpec((tm, tn), lambda i, j: (i, j)),
            ],
        )
        return pl.pallas_call(
            _dft_kernel,
            out_shape=out_shape,
            grid_spec=grid_spec,
            compiler_params=compiler_params,
            cost_estimate=cost,
        )(x2d, cos_m, nsin_m)

    try:
        real2d, imag2d = run(True)
    except Exception:
        # Fallback: default double-buffered basis (already budgeted for above).
        real2d, imag2d = run(False)

    if rows_padded != rows:
        real2d = real2d[:rows]
        imag2d = imag2d[:rows]

    # TODO(synk): for n < 128 the (tm, n) output blocks are lane-sparse (masked
    # vst); folding several length-n rows into the 128-lane axis would avoid it.
    # TODO(synk): real-input conjugate symmetry (rfft-style half-spectrum +
    # mirror) would halve flops/basis bytes; skipped to keep a 1:1 mapping to
    # torch.fft.fft semantics.
    return real2d.reshape(orig_shape), imag2d.reshape(orig_shape)


if __name__ == "__main__":
    key = jax.random.PRNGKey(0)
    # Shapes implied by the forward: (batch=2, seq=8, hidden=32), FFT over hidden.
    x = jax.random.normal(key, (2, 8, 32), dtype=jnp.float32)

    fft_real, fft_imag = fft1d_layer(x)
    jax.block_until_ready((fft_real, fft_imag))

    # Reference check against jnp.fft.fft (same semantics as torch.fft.fft, dim=-1).
    ref = jnp.fft.fft(x, axis=-1)
    assert jnp.allclose(fft_real, ref.real, atol=1e-3, rtol=1e-3)
    assert jnp.allclose(fft_imag, ref.imag, atol=1e-3, rtol=1e-3)

    print("KERNEL_OK")
</pallas_src>

<mosaic_0001>
module attributes {stable_mosaic.version = 11 : i64} {
  func.func @_dft_kernel(%arg0: i32, %arg1: i32, %arg2: memref<8x32xf32, #tpu.memory_space<vmem>>, %arg3: memref<32x32xf32, #tpu.memory_space<vmem>>, %arg4: memref<32x32xf32, #tpu.memory_space<vmem>>, %arg5: memref<8x32xf32, #tpu.memory_space<vmem>>, %arg6: memref<8x32xf32, #tpu.memory_space<vmem>>) attributes {dimension_semantics = [#tpu.dimension_semantics<parallel>, #tpu.dimension_semantics<arbitrary>], iteration_bounds = array<i64: 2, 1>, scalar_prefetch = 0 : i64, scratch_operands = 0 : i64, tpu.core_type = #tpu.core_type<tc>, window_params = [{transform_indices = @transform_0, window_bounds = array<i64: 8, 32>}, {pipeline_mode = #tpu.pipeline_mode<synchronous>, transform_indices = @transform_1, window_bounds = array<i64: 32, 32>}, {pipeline_mode = #tpu.pipeline_mode<synchronous>, transform_indices = @transform_2, window_bounds = array<i64: 32, 32>}, {transform_indices = @transform_3, window_bounds = array<i64: 8, 32>}, {transform_indices = @transform_4, window_bounds = array<i64: 8, 32>}]} {
    %c0 = arith.constant 0 : index
    %c0_0 = arith.constant 0 : index
    %0 = vector.load %arg2[%c0, %c0_0] : memref<8x32xf32, #tpu.memory_space<vmem>>, vector<8x32xf32>
    %c0_1 = arith.constant 0 : index
    %c0_2 = arith.constant 0 : index
    %1 = vector.load %arg3[%c0_1, %c0_2] : memref<32x32xf32, #tpu.memory_space<vmem>>, vector<32x32xf32>
    %cst = arith.constant dense<0.000000e+00> : vector<8x32xf32>
    %2 = tpu.matmul %0, %1, %cst {dimension_numbers = #tpu.dot_dimension_numbers<[1], [0], [0], [1], [0, 0, 1, 1], [], []>} : vector<8x32xf32>, vector<32x32xf32>, vector<8x32xf32> -> vector<8x32xf32>
    %c0_3 = arith.constant 0 : index
    %c0_4 = arith.constant 0 : index
    %3 = vector.load %arg5[%c0_3, %c0_4] : memref<8x32xf32, #tpu.memory_space<vmem>>, vector<8x32xf32>
    tpu.vector_store %arg5[%c0_3, %c0_4], %2 {strides = array<i32>} : memref<8x32xf32, #tpu.memory_space<vmem>>, vector<8x32xf32>,
    %c0_5 = arith.constant 0 : index
    %c0_6 = arith.constant 0 : index
    %4 = vector.load %arg4[%c0_5, %c0_6] : memref<32x32xf32, #tpu.memory_space<vmem>>, vector<32x32xf32>
    %cst_7 = arith.constant dense<0.000000e+00> : vector<8x32xf32>
    %5 = tpu.matmul %0, %4, %cst_7 {dimension_numbers = #tpu.dot_dimension_numbers<[1], [0], [0], [1], [0, 0, 1, 1], [], []>} : vector<8x32xf32>, vector<32x32xf32>, vector<8x32xf32> -> vector<8x32xf32>
    %c0_8 = arith.constant 0 : index
    %c0_9 = arith.constant 0 : index
    %6 = vector.load %arg6[%c0_8, %c0_9] : memref<8x32xf32, #tpu.memory_space<vmem>>, vector<8x32xf32>
    tpu.vector_store %arg6[%c0_8, %c0_9], %5 {strides = array<i32>} : memref<8x32xf32, #tpu.memory_space<vmem>>, vector<8x32xf32>,
    return
  }
  func.func @transform_0(%arg0: i32, %arg1: i32) -> (i32, i32) {
    %c0_i32 = arith.constant 0 : i32
    %c0_i32_0 = arith.constant 0 : i32
    return %arg0, %c0_i32 : i32, i32
  }
  func.func @transform_1(%arg0: i32, %arg1: i32) -> (i32, i32) {
    %c0_i32 = arith.constant 0 : i32
    %c0_i32_0 = arith.constant 0 : i32
    return %c0_i32, %arg1 : i32, i32
  }
  func.func @transform_2(%arg0: i32, %arg1: i32) -> (i32, i32) {
    %c0_i32 = arith.constant 0 : i32
    %c0_i32_0 = arith.constant 0 : i32
    return %c0_i32, %arg1 : i32, i32
  }
  func.func @transform_3(%arg0: i32, %arg1: i32) -> (i32, i32) {
    %c0_i32 = arith.constant 0 : i32
    return %arg0, %arg1 : i32, i32
  }
  func.func @transform_4(%arg0: i32, %arg1: i32) -> (i32, i32) {
    %c0_i32 = arith.constant 0 : i32
    return %arg0, %arg1 : i32, i32
  }
}

module attributes {stable_mosaic.version = 11 : i64} {
  func.func @_dft_kernel(%arg0: i32, %arg1: i32, %arg2: memref<8x32xf32, #tpu.memory_space<vmem>>, %arg3: memref<32x32xf32, #tpu.memory_space<vmem>>, %arg4: memref<32x32xf32, #tpu.memory_space<vmem>>, %arg5: memref<8x32xf32, #tpu.memory_space<vmem>>, %arg6: memref<8x32xf32, #tpu.memory_space<vmem>>) attributes {dimension_semantics = [#tpu.dimension_semantics<parallel>, #tpu.dimension_semantics<arbitrary>], iteration_bounds = array<i64: 2, 1>, scalar_prefetch = 0 : i64, scratch_operands = 0 : i64, tpu.core_type = #tpu.core_type<tc>, window_params = [{transform_indices = @transform_0, window_bounds = array<i64: 8, 32>}, {transform_indices = @transform_1, window_bounds = array<i64: 32, 32>}, {transform_indices = @transform_2, window_bounds = array<i64: 32, 32>}, {transform_indices = @transform_3, window_bounds = array<i64: 8, 32>}, {transform_indices = @transform_4, window_bounds = array<i64: 8, 32>}]} {
    %c0 = arith.constant 0 : index
    %c0_0 = arith.constant 0 : index
    %0 = vector.load %arg2[%c0, %c0_0] : memref<8x32xf32, #tpu.memory_space<vmem>>, vector<8x32xf32>
    %c0_1 = arith.constant 0 : index
    %c0_2 = arith.constant 0 : index
    %1 = vector.load %arg3[%c0_1, %c0_2] : memref<32x32xf32, #tpu.memory_space<vmem>>, vector<32x32xf32>
    %cst = arith.constant dense<0.000000e+00> : vector<8x32xf32>
    %2 = tpu.matmul %0, %1, %cst {dimension_numbers = #tpu.dot_dimension_numbers<[1], [0], [0], [1], [0, 0, 1, 1], [], []>} : vector<8x32xf32>, vector<32x32xf32>, vector<8x32xf32> -> vector<8x32xf32>
    %c0_3 = arith.constant 0 : index
    %c0_4 = arith.constant 0 : index
    %3 = vector.load %arg5[%c0_3, %c0_4] : memref<8x32xf32, #tpu.memory_space<vmem>>, vector<8x32xf32>
    tpu.vector_store %arg5[%c0_3, %c0_4], %2 {strides = array<i32>} : memref<8x32xf32, #tpu.memory_space<vmem>>, vector<8x32xf32>,
    %c0_5 = arith.constant 0 : index
    %c0_6 = arith.constant 0 : index
    %4 = vector.load %arg4[%c0_5, %c0_6] : memref<32x32xf32, #tpu.memory_space<vmem>>, vector<32x32xf32>
    %cst_7 = arith.constant dense<0.000000e+00> : vector<8x32xf32>
    %5 = tpu.matmul %0, %4, %cst_7 {dimension_numbers = #tpu.dot_dimension_numbers<[1], [0], [0], [1], [0, 0, 1, 1], [], []>} : vector<8x32xf32>, vector<32x32xf32>, vector<8x32xf32> -> vector<8x32xf32>
    %c0_8 = arith.constant 0 : index
    %c0_9 = arith.constant 0 : index
    %6 = vector.load %arg6[%c0_8, %c0_9] : memref<8x32xf32, #tpu.memory_space<vmem>>, vector<8x32xf32>
    tpu.vector_store %arg6[%c0_8, %c0_9], %5 {strides = array<i32>} : memref<8x32xf32, #tpu.memory_space<vmem>>, vector<8x32xf32>,
    return
  }
  func.func @transform_0(%arg0: i32, %arg1: i32) -> (i32, i32) {
    %c0_i32 = arith.constant 0 : i32
    %c0_i32_0 = arith.constant 0 : i32
    return %arg0, %c0_i32 : i32, i32
  }
  func.func @transform_1(%arg0: i32, %arg1: i32) -> (i32, i32) {
    %c0_i32 = arith.constant 0 : i32
    %c0_i32_0 = arith.constant 0 : i32
    return %c0_i32, %arg1 : i32, i32
  }
  func.func @transform_2(%arg0: i32, %arg1: i32) -> (i32, i32) {
    %c0_i32 = arith.constant 0 : i32
    %c0_i32_0 = arith.constant 0 : i32
    return %c0_i32, %arg1 : i32, i32
  }
  func.func @transform_3(%arg0: i32, %arg1: i32) -> (i32, i32) {
    %c0_i32 = arith.constant 0 : i32
    return %arg0, %arg1 : i32, i32
  }
  func.func @transform_4(%arg0: i32, %arg1: i32) -> (i32, i32) {
    %c0_i32 = arith.constant 0 : i32
    return %arg0, %arg1 : i32, i32
  }
}

</mosaic_0001>

<llo_original>
// kernel: tpu_custom_call.1
$region0: #{tpu_custom_call.1}
  #allocation0 [shape = 'u32[]', space=smem, size = 0x4, offset = 0x4, fixed_abs, tag = 'smem constant byte address 0x4 - core index']
  #allocation1 [shape = 'u32[144,128]{1,0:T(1,128)}', space=vmem, size = 0x12000, scoped, tag = 'internal scratch']
  %s0 = inlined_call_operand.hbm [shape: f32[16,32], index: 0, kind: input, shape index: {}]
  %s1 = inlined_call_operand.hbm [shape: f32[32,32], index: 1, kind: input, shape index: {}]
  %s2 = inlined_call_operand.hbm [shape: f32[32,32], index: 2, kind: input, shape index: {}]
  %s3 = inlined_call_operand.hbm [shape: f32[16,32], index: 3, kind: output, shape index: {0}]
  %s4 = inlined_call_operand.hbm [shape: f32[16,32], index: 4, kind: output, shape index: {1}]
  %5 = xla_tuple %s3, %s4
  %s6 = sld [smem:[#allocation0]]
  $region65: #{tpu_custom_call.1} parent=0
    _
  %s8 = ssub.s32 1, %s6
  %s9 = scalar_select 0, %s8, %s6
  $region1: #{tpu_custom_call.1} parent=0
    #allocation2 [shape = 'u8[8192]{0}', space=vmem, size = 0x2000, scoped, tag = 'input window, operand 0']
    #allocation3 [shape = 's32[2]{0}', space=sflag, size = 0x8, scoped, tag = 'scoped memory for tpu_custom_call.1']
    #allocation4 [shape = 's32[2]{0}', space=sflag, size = 0x8, scoped, tag = 'scoped memory for tpu_custom_call.1']
    #allocation5 [shape = 'u8[16384]{0}', space=vmem, size = 0x4000, scoped, tag = 'input window, operand 1, single buffered']
    #allocation6 [shape = 's32[1]{0}', space=sflag, size = 0x4, scoped, tag = 'scoped memory for tpu_custom_call.1']
    #allocation7 [shape = 'u8[16384]{0}', space=vmem, size = 0x4000, scoped, tag = 'input window, operand 2, single buffered']
    #allocation8 [shape = 'u8[8192]{0}', space=vmem, size = 0x2000, scoped, tag = 'output window, operand 0']
    #allocation9 [shape = 'u8[8192]{0}', space=vmem, size = 0x2000, scoped, tag = 'output window, operand 1']
    #allocation10 [shape = 's32[2]{0}', space=sflag, size = 0x8, scoped, tag = 'scoped memory for tpu_custom_call.1']
    %10 = vsyncpa [#allocation3], 0
    %s11 = scalar_lea.sflag [#allocation3], 1
    %12 = vsyncpa %s11, 0
    %13 = vsyncpa [#allocation6], 0
    %14 = vsyncpa [#allocation4], 0
    %s15 = scalar_lea.sflag [#allocation4], 1
    %16 = vsyncpa %s15, 0
    %17 = vsyncpa [#allocation10], 0
    %s18 = scalar_lea.sflag [#allocation10], 1
    %19 = vsyncpa %s18, 0
    loop: start=0, step=1, limit=4
    $region2: #{tpu_custom_call.1} parent=1 // loop_pre_header
      _
    $region3: #{tpu_custom_call.1} parent=1 // loop_header
      %s21 = sphi 0, %s25
      %p22 = scmp.ge.s32.totalorder %s21, 4
      %s28 = sphi 0, %s40
      %s29 = sphi 0, %s36
      %s30 = sphi 0, %s28
      %s31 = sphi 0, %s29
      %s32 = sphi 0, %s30
      %s33 = sphi 0, %s31
      %s43 = sphi 0, %s45
      %s46 = sphi 0, %s43
      %s47 = sphi 0, %s46
      %s63 = sphi 0, %s47
      %s69 = sphi 0, %s71
      %s72 = sphi 0, %s69
      %s73 = sphi 0, %s72
      %s89 = sphi 0, %s73
      %s95 = sphi 0, %s97
      %s98 = sphi 0, %s95
      %s99 = sphi 0, %s98
      %s115 = sphi 0, %s99
      %s123 = sphi 0, %s125
      %s126 = sphi 0, %s123
      %s127 = sphi 0, %s126
      %s143 = sphi 0, %s127
      %s151 = sphi 0, %s153
      %s154 = sphi 0, %s151
      %s155 = sphi 0, %s154
      %s171 = sphi 0, %s155
    $region4: #{tpu_custom_call.1} parent=1 // loop_header_branch
      %24 = sbr.rel (%p22) target = $region8
    $region5: #{tpu_custom_call.1} parent=1 // loop_body
      %s26 = ssub.s32 %s21, 1
      %s27 = ssub.s32 %s21, 2
      %s34 = sadd.s32 1, %s29
      %p35 = scmp.ge.s32.totalorder %s34, 1
      %s36 = scalar_select %p35, 0, %s34
      %s37 = sadd.s32 1, %s28
      %s38 = scalar_select %p35, %s37, %s28
      %p39 = scmp.ge.s32.totalorder %s38, 2
      %s40 = scalar_select %p39, 0, %s38
      %s41 = ssub.s32 %s28, %s40
      %p42 = scmp.eq.s32.totalorder %s41, 0
      %s44 = sadd.s32 %s43, 1
      %s45 = scalar_select %p42, %s43, %s44
      %p48 = pneg %p42
      %p49 = scmp.eq.s32.totalorder %s21, 1
      %p50 = por %p48, %p49
      %p51 = scmp.ne.s32.totalorder %s43, %s46
      %p52 = scmp.eq.s32.totalorder %s21, 0
      %p53 = por %p51, %p52
      %p54 = scmp.ne.s32.totalorder %s43, %s46
      %p55 = scmp.eq.s32.totalorder %s26, 1
      %p56 = por %p54, %p55
      %p57 = scmp.ne.s32.totalorder %s46, %s47
      %p58 = scmp.eq.s32.totalorder %s26, 0
      %p59 = por %p57, %p58
      %p60 = scmp.ne.s32.totalorder %s46, %s47
      %p61 = scmp.eq.s32.totalorder %s27, 1
      %p62 = por %p60, %p61
      %p64 = scmp.ne.s32.totalorder %s47, %s63
      %p65 = scmp.eq.s32.totalorder %s27, 0
      %p66 = por %p64, %p65
      %s67 = ssub.s32 %s29, %s36
      %p68 = scmp.eq.s32.totalorder %s67, 0
      %s70 = sadd.s32 %s69, 1
      %s71 = scalar_select %p68, %s69, %s70
      %p74 = pneg %p68
      %p75 = scmp.eq.s32.totalorder %s21, 1
      %p76 = por %p74, %p75
      %p77 = scmp.ne.s32.totalorder %s69, %s72
      %p78 = scmp.eq.s32.totalorder %s21, 0
      %p79 = por %p77, %p78
      %p80 = scmp.ne.s32.totalorder %s69, %s72
      %p81 = scmp.eq.s32.totalorder %s26, 1
      %p82 = por %p80, %p81
      %p83 = scmp.ne.s32.totalorder %s72, %s73
      %p84 = scmp.eq.s32.totalorder %s26, 0
      %p85 = por %p83, %p84
      %p86 = scmp.ne.s32.totalorder %s72, %s73
      %p87 = scmp.eq.s32.totalorder %s27, 1
      %p88 = por %p86, %p87
      %p90 = scmp.ne.s32.totalorder %s73, %s89
      %p91 = scmp.eq.s32.totalorder %s27, 0
      %p92 = por %p90, %p91
      %s93 = ssub.s32 %s29, %s36
      %p94 = scmp.eq.s32.totalorder %s93, 0
      %s96 = sadd.s32 %s95, 1
      %s97 = scalar_select %p94, %s95, %s96
      %p100 = pneg %p94
      %p101 = scmp.eq.s32.totalorder %s21, 1
      %p102 = por %p100, %p101
      %p103 = scmp.ne.s32.totalorder %s95, %s98
      %p104 = scmp.eq.s32.totalorder %s21, 0
      %p105 = por %p103, %p104
      %p106 = scmp.ne.s32.totalorder %s95, %s98
      %p107 = scmp.eq.s32.totalorder %s26, 1
      %p108 = por %p106, %p107
      %p109 = scmp.ne.s32.totalorder %s98, %s99
      %p110 = scmp.eq.s32.totalorder %s26, 0
      %p111 = por %p109, %p110
      %p112 = scmp.ne.s32.totalorder %s98, %s99
      %p113 = scmp.eq.s32.totalorder %s27, 1
      %p114 = por %p112, %p113
      %p116 = scmp.ne.s32.totalorder %s99, %s115
      %p117 = scmp.eq.s32.totalorder %s27, 0
      %p118 = por %p116, %p117
      %s119 = ssub.s32 %s28, %s40
      %s120 = ssub.s32 %s29, %s36
      %s121 = sor.u32 %s119, %s120
      %p122 = scmp.eq.s32.totalorder %s121, 0
      %s124 = sadd.s32 %s123, 1
      %s125 = scalar_select %p122, %s123, %s124
      %p128 = pneg %p122
      %p129 = scmp.eq.s32.totalorder %s21, 1
      %p130 = por %p128, %p129
      %p131 = scmp.ne.s32.totalorder %s123, %s126
      %p132 = scmp.eq.s32.totalorder %s21, 0
      %p133 = por %p131, %p132
      %p134 = scmp.ne.s32.totalorder %s123, %s126
      %p135 = scmp.eq.s32.totalorder %s26, 1
      %p136 = por %p134, %p135
      %p137 = scmp.ne.s32.totalorder %s126, %s127
      %p138 = scmp.eq.s32.totalorder %s26, 0
      %p139 = por %p137, %p138
      %p140 = scmp.ne.s32.totalorder %s126, %s127
      %p141 = scmp.eq.s32.totalorder %s27, 1
      %p142 = por %p140, %p141
      %p144 = scmp.ne.s32.totalorder %s127, %s143
      %p145 = scmp.eq.s32.totalorder %s27, 0
      %p146 = por %p144, %p145
      %s147 = ssub.s32 %s28, %s40
      %s148 = ssub.s32 %s29, %s36
      %s149 = sor.u32 %s147, %s148
      %p150 = scmp.eq.s32.totalorder %s149, 0
      %s152 = sadd.s32 %s151, 1
      %s153 = scalar_select %p150, %s151, %s152
      %p156 = pneg %p150
      %p157 = scmp.eq.s32.totalorder %s21, 1
      %p158 = por %p156, %p157
      %p159 = scmp.ne.s32.totalorder %s151, %s154
      %p160 = scmp.eq.s32.totalorder %s21, 0
      %p161 = por %p159, %p160
      %p162 = scmp.ne.s32.totalorder %s151, %s154
      %p163 = scmp.eq.s32.totalorder %s26, 1
      %p164 = por %p162, %p163
      %p165 = scmp.ne.s32.totalorder %s154, %s155
      %p166 = scmp.eq.s32.totalorder %s26, 0
      %p167 = por %p165, %p166
      %p168 = scmp.ne.s32.totalorder %s154, %s155
      %p169 = scmp.eq.s32.totalorder %s27, 1
      %p170 = por %p168, %p169
      %p172 = scmp.ne.s32.totalorder %s155, %s171
      %p173 = scmp.eq.s32.totalorder %s27, 0
      %p174 = por %p172, %p173
      %p175 = scmp.le.s32.totalorder 1, %s21
      %p176 = scmp.lt.s32.totalorder %s21, 3
      %p177 = pnand %p175, %p176
      %p178 = pneg %p177
      // Predicated region
      $region9: #{tpu_custom_call.1} parent=5 // pred_check
        _
      $region10: #{tpu_custom_call.1} parent=5 // pred_check_branch
        %180 = sbr.rel (%p177) target = $region12
      $region11: #{tpu_custom_call.1} parent=5 // pred_region
        %s181 = ssub.s32 %s21, 1
        // Predicated region
        $region13: #{tpu_custom_call.1} parent=11 // pred_check
          %p182 = pneg %p85
        $region14: #{tpu_custom_call.1} parent=11 // pred_check_branch
          %184 = sbr.rel (%p182) target = $region16
        $region15: #{tpu_custom_call.1} parent=11 // pred_region
          %s186 = ssub.s32 512, 512
          %187 = vsyncadd [#allocation6], %s186
          %s188 = smul.addr %s31, 128
          %s189 = scalar_lea.hbm %s1, %s188
          %s190 = sshll.u32 [#allocation5], 4
          %s191 = int_to_ptr.vmem [resolvable:$true] %s190
          %196 = dma.hbm_to_vmem [thread:$0]  %s189, 512, %s191, [#allocation6], 128, 128, 8
        $region16: #{tpu_custom_call.1} parent=11 // pred_fallthru
          _
        // Predicated region
        $region17: #{tpu_custom_call.1} parent=11 // pred_check
          %p197 = pneg %p111
        $region18: #{tpu_custom_call.1} parent=11 // pred_check_branch
          %199 = sbr.rel (%p197) target = $region20
        $region19: #{tpu_custom_call.1} parent=11 // pred_region
          %s201 = ssub.s32 512, 512
          %202 = vsyncadd [#allocation6], %s201
          %s203 = smul.addr %s31, 128
          %s204 = scalar_lea.hbm %s2, %s203
          %s205 = sshll.u32 [#allocation7], 4
          %s206 = int_to_ptr.vmem [resolvable:$true] %s205
          %211 = dma.hbm_to_vmem [thread:$0]  %s204, 512, %s206, [#allocation6], 128, 128, 8
        $region20: #{tpu_custom_call.1} parent=11 // pred_fallthru
          _
      $region12: #{tpu_custom_call.1} parent=5 // pred_fallthru
        _
      %p212 = scmp.lt.s32.totalorder %s21, 2
      // Predicated region
      $region21: #{tpu_custom_call.1} parent=5 // pred_check
        %p213 = pneg %p212
      $region22: #{tpu_custom_call.1} parent=5 // pred_check_branch
        %215 = sbr.rel (%p213) target = $region24
      $region23: #{tpu_custom_call.1} parent=5 // pred_region
        // Predicated region
        $region25: #{tpu_custom_call.1} parent=23 // pred_check
          %p216 = pneg %p53
        $region26: #{tpu_custom_call.1} parent=23 // pred_check_branch
          %218 = sbr.rel (%p216) target = $region28
        $region27: #{tpu_custom_call.1} parent=23 // pred_region
          %s219 = sand.u32 %s43, 1
          %s220 = scalar_lea.sflag [#allocation3], %s219
          %s221 = sand.u32 %s43, 1
          %s222 = smul.addr %s221, 8
          %s223 = scalar_lea.vmem [#allocation2], %s222
          %s225 = ssub.s32 128, 128
          %226 = vsyncadd %s220, %s225
          %s227 = smul.addr %s28, 128
          %s228 = scalar_lea.hbm %s0, %s227
          %s230 = sshll.u32 %s223, 4
          %s231 = int_to_ptr.vmem [resolvable:$true] %s230
          %233 = dma.hbm_to_vmem [thread:$0]  %s228, 128, %s231, %s220
        $region28: #{tpu_custom_call.1} parent=23 // pred_fallthru
          _
      $region24: #{tpu_custom_call.1} parent=5 // pred_fallthru
        _
      %p234 = scmp.le.s32.totalorder 1, %s21
      %p235 = scmp.lt.s32.totalorder %s21, 3
      %p236 = pnand %p234, %p235
      %p237 = pneg %p236
      // Predicated region
      $region29: #{tpu_custom_call.1} parent=5 // pred_check
        _
      $region30: #{tpu_custom_call.1} parent=5 // pred_check_branch
        %239 = sbr.rel (%p236) target = $region32
      $region31: #{tpu_custom_call.1} parent=5 // pred_region
        %s240 = ssub.s32 %s21, 1
        %s241 = sand.u32 %s46, 1
        %s242 = scalar_lea.sflag [#allocation3], %s241
        %s243 = sand.u32 %s46, 1
        %s244 = smul.addr %s243, 8
        %s245 = scalar_lea.vmem [#allocation2], %s244
        // Predicated region
        $region33: #{tpu_custom_call.1} parent=31 // pred_check
          %p246 = pneg %p59
        $region34: #{tpu_custom_call.1} parent=31 // pred_check_branch
          %248 = sbr.rel (%p246) target = $region36
        $region35: #{tpu_custom_call.1} parent=31 // pred_region
          %249 = dma.done %s242, 128
        $region36: #{tpu_custom_call.1} parent=31 // pred_fallthru
          _
        // Predicated region
        $region37: #{tpu_custom_call.1} parent=31 // pred_check
          %p250 = pneg %p85
        $region38: #{tpu_custom_call.1} parent=31 // pred_check_branch
          %252 = sbr.rel (%p250) target = $region40
        $region39: #{tpu_custom_call.1} parent=31 // pred_region
          %253 = dma.done [#allocation6], 512
        $region40: #{tpu_custom_call.1} parent=31 // pred_fallthru
          _
        // Predicated region
        $region41: #{tpu_custom_call.1} parent=31 // pred_check
          %p254 = pneg %p111
        $region42: #{tpu_custom_call.1} parent=31 // pred_check_branch
          %256 = sbr.rel (%p254) target = $region44
        $region43: #{tpu_custom_call.1} parent=31 // pred_region
          %257 = dma.done [#allocation6], 512
        $region44: #{tpu_custom_call.1} parent=31 // pred_fallthru
          _
        %s258 = sand.u32 %s46, 1
        %s259 = scalar_lea.sflag [#allocation3], %s258
        %s260 = sand.u32 %s46, 1
        %s261 = smul.addr %s260, 8
        %s262 = scalar_lea.vmem [#allocation2], %s261
        %p263 = pneg %p59
        %p264 = pneg %p56
        %p265 = pneg %p85
        %p266 = pneg %p82
        %p267 = pneg %p111
        %p268 = pneg %p108
        %p269 = pneg %p139
        %p270 = pneg %p136
        %s271 = sand.u32 %s126, 1
        %s272 = scalar_lea.sflag [#allocation4], %s271
        %s273 = sand.u32 %s126, 1
        %s274 = smul.addr %s273, 8
        %s275 = scalar_lea.vmem [#allocation8], %s274
        %p276 = pneg %p167
        %p277 = pneg %p164
        %s278 = sand.u32 %s154, 1
        %s279 = scalar_lea.sflag [#allocation10], %s278
        %s280 = sand.u32 %s154, 1
        %s281 = smul.addr %s280, 8
        %s282 = scalar_lea.vmem [#allocation9], %s281
        %v283 = vld [vmem:[%s245] sm:$0xff]
        %v284 = vld [vmem:[#allocation5] sm:$0xff]
        %v285 = vld [vmem:[#allocation5 + $0x8] sm:$0xff]
        %v286 = vld [vmem:[#allocation5 + $0x10] sm:$0xff]
        %v287 = vld [vmem:[#allocation5 + $0x18] sm:$0xff]
        %vm288 = vcmask 261120
        %v290 = vsel %vm288, %v283, 0
        %292 = vmatprep.subr.mxu0 0.0
        %293 = vmatpush1.msra.mxu0 %v284
        %294 = vmatprep.subr.mxu0 0.0
        %295 = vmatpush1.msra.mxu0 %v285
        %296 = vmatprep.subr.mxu0 0.0
        %297 = vmatpush1.msra.mxu0 %v286
        %298 = vmatprep.subr.mxu0 0.0
        %299 = vmatpush1.msra.mxu0 %v287
        %300 = vmatprep.subr.mxu0 0.0
        %301 = vmatpush1.msra.mxu0 0.0
        %302 = vmatprep.subr.mxu0 0.0
        %303 = vmatpush1.msra.mxu0 0.0
        %304 = vmatprep.subr.mxu0 0.0
        %305 = vmatpush1.msra.mxu0 0.0
        %306 = vmatprep.subr.mxu0 0.0
        %307 = vmatpush1.msra.mxu0 0.0
        %308 = vmatprep.subr.mxu0 0.0
        %309 = vmatpush1.msra.mxu0 0.0
        %310 = vmatprep.subr.mxu0 0.0
        %311 = vmatpush1.msra.mxu0 0.0
        %312 = vmatprep.subr.mxu0 0.0
        %313 = vmatpush1.msra.mxu0 0.0
        %314 = vmatprep.subr.mxu0 0.0
        %315 = vmatpush1.msra.mxu0 0.0
        %316 = vmatprep.subr.mxu0 0.0
        %317 = vmatpush1.msra.mxu0 0.0
        %318 = vmatprep.subr.mxu0 0.0
        %319 = vmatpush1.msra.mxu0 0.0
        %320 = vmatprep.subr.mxu0 0.0
        %321 = vmatpush1.msra.mxu0 0.0
        %322 = vmatprep.subr.mxu0 0.0
        %323 = vmatpush1.msra.mxu0 0.0
        %324 = vmatprep.subr.mxu0 0.0
        %325 = vmatpush1.msra.mxu0 0.0
        %326 = vmatprep.subr.mxu0 0.0
        %327 = vmatpush1.msra.mxu0 0.0
        %328 = vmatprep.subr.mxu0 0.0
        %329 = vmatpush1.msra.mxu0 0.0
        %330 = vmatprep.subr.mxu0 0.0
        %331 = vmatpush1.msra.mxu0 0.0
        %332 = vmatprep.subr.mxu0 0.0
        %333 = vmatpush1.msra.mxu0 0.0
        %334 = vmatprep.subr.mxu0 0.0
        %335 = vmatpush1.msra.mxu0 0.0
        %336 = vmatprep.subr.mxu0 0.0
        %337 = vmatpush1.msra.mxu0 0.0
        %338 = vmatprep.subr.mxu0 0.0
        %339 = vmatpush1.msra.mxu0 0.0
        %340 = vmatprep.subr.mxu0 0.0
        %341 = vmatpush1.msra.mxu0 0.0
        %342 = vmatprep.subr.mxu0 0.0
        %343 = vmatpush1.msra.mxu0 0.0
        %344 = vmatprep.subr.mxu0 0.0
        %345 = vmatpush1.msra.mxu0 0.0
        %346 = vmatprep.subr.mxu0 0.0
        %347 = vmatpush1.msra.mxu0 0.0
        %348 = vmatprep.subr.mxu0 0.0
        %349 = vmatpush1.msra.mxu0 0.0
        %350 = vmatprep.subr.mxu0 0.0
        %351 = vmatpush1.msra.mxu0 0.0
        %352 = vmatprep.subr.mxu0 0.0
        %353 = vmatpush1.msra.mxu0 0.0
        %354 = vmatprep.subr.mxu0 0.0
        %355 = vmatpush1.msra.mxu0 0.0
        %356 = vmatprep.mubr.f32.mxu0 0.0
        %357 = vmatmul.mubr.f32.gmra.mrb[0].mxu0 %v290
        %v358 = vpop.f32.mrb[0].mxu0
        %v359 = vadd.f32 0.0, %v358
        %v360 = vpop.f32.mrb[0].mxu0
        %361 = vdwg.mxu0
        %362 = vst.msk [vmem:[%s275] sm:$0xff] %vm288, %v359
        %v363 = vld [vmem:[#allocation7] sm:$0xff]
        %v364 = vld [vmem:[#allocation7 + $0x8] sm:$0xff]
        %v365 = vld [vmem:[#allocation7 + $0x10] sm:$0xff]
        %v366 = vld [vmem:[#allocation7 + $0x18] sm:$0xff]
        %367 = vmatprep.subr.mxu0 0.0
        %368 = vmatpush1.msra.mxu0 %v363
        %369 = vmatprep.subr.mxu0 0.0
        %370 = vmatpush1.msra.mxu0 %v364
        %371 = vmatprep.subr.mxu0 0.0
        %372 = vmatpush1.msra.mxu0 %v365
        %373 = vmatprep.subr.mxu0 0.0
        %374 = vmatpush1.msra.mxu0 %v366
        %375 = vmatprep.subr.mxu0 0.0
        %376 = vmatpush1.msra.mxu0 0.0
        %377 = vmatprep.subr.mxu0 0.0
        %378 = vmatpush1.msra.mxu0 0.0
        %379 = vmatprep.subr.mxu0 0.0
        %380 = vmatpush1.msra.mxu0 0.0
        %381 = vmatprep.subr.mxu0 0.0
        %382 = vmatpush1.msra.mxu0 0.0
        %383 = vmatprep.subr.mxu0 0.0
        %384 = vmatpush1.msra.mxu0 0.0
        %385 = vmatprep.subr.mxu0 0.0
        %386 = vmatpush1.msra.mxu0 0.0
        %387 = vmatprep.subr.mxu0 0.0
        %388 = vmatpush1.msra.mxu0 0.0
        %389 = vmatprep.subr.mxu0 0.0
        %390 = vmatpush1.msra.mxu0 0.0
        %391 = vmatprep.subr.mxu0 0.0
        %392 = vmatpush1.msra.mxu0 0.0
        %393 = vmatprep.subr.mxu0 0.0
        %394 = vmatpush1.msra.mxu0 0.0
        %395 = vmatprep.subr.mxu0 0.0
        %396 = vmatpush1.msra.mxu0 0.0
        %397 = vmatprep.subr.mxu0 0.0
        %398 = vmatpush1.msra.mxu0 0.0
        %399 = vmatprep.subr.mxu0 0.0
        %400 = vmatpush1.msra.mxu0 0.0
        %401 = vmatprep.subr.mxu0 0.0
        %402 = vmatpush1.msra.mxu0 0.0
        %403 = vmatprep.subr.mxu0 0.0
        %404 = vmatpush1.msra.mxu0 0.0
        %405 = vmatprep.subr.mxu0 0.0
        %406 = vmatpush1.msra.mxu0 0.0
        %407 = vmatprep.subr.mxu0 0.0
        %408 = vmatpush1.msra.mxu0 0.0
        %409 = vmatprep.subr.mxu0 0.0
        %410 = vmatpush1.msra.mxu0 0.0
        %411 = vmatprep.subr.mxu0 0.0
        %412 = vmatpush1.msra.mxu0 0.0
        %413 = vmatprep.subr.mxu0 0.0
        %414 = vmatpush1.msra.mxu0 0.0
        %415 = vmatprep.subr.mxu0 0.0
        %416 = vmatpush1.msra.mxu0 0.0
        %417 = vmatprep.subr.mxu0 0.0
        %418 = vmatpush1.msra.mxu0 0.0
        %419 = vmatprep.subr.mxu0 0.0
        %420 = vmatpush1.msra.mxu0 0.0
        %421 = vmatprep.subr.mxu0 0.0
        %422 = vmatpush1.msra.mxu0 0.0
        %423 = vmatprep.subr.mxu0 0.0
        %424 = vmatpush1.msra.mxu0 0.0
        %425 = vmatprep.subr.mxu0 0.0
        %426 = vmatpush1.msra.mxu0 0.0
        %427 = vmatprep.subr.mxu0 0.0
        %428 = vmatpush1.msra.mxu0 0.0
        %429 = vmatprep.subr.mxu0 0.0
        %430 = vmatpush1.msra.mxu0 0.0
        %431 = vmatprep.mubr.f32.mxu0 0.0
        %432 = vmatmul.mubr.f32.gmra.mrb[0].mxu0 %v290
        %v433 = vpop.f32.mrb[0].mxu0
        %v434 = vadd.f32 0.0, %v433
        %v435 = vpop.f32.mrb[0].mxu0
        %436 = vdwg.mxu0
        %437 = vst.msk [vmem:[%s282] sm:$0xff] %vm288, %v434
        %s438 = sand.u32 %s126, 1
        %s439 = scalar_lea.sflag [#allocation4], %s438
        %s440 = sand.u32 %s126, 1
        %s441 = smul.addr %s440, 8
        %s442 = scalar_lea.vmem [#allocation8], %s441
        %s443 = sand.u32 %s154, 1
        %s444 = scalar_lea.sflag [#allocation10], %s443
        %s445 = sand.u32 %s154, 1
        %s446 = smul.addr %s445, 8
        %s447 = scalar_lea.vmem [#allocation9], %s446
        // Predicated region
        $region45: #{tpu_custom_call.1} parent=31 // pred_check
          %p448 = pneg %p136
        $region46: #{tpu_custom_call.1} parent=31 // pred_check_branch
          %450 = sbr.rel (%p448) target = $region48
        $region47: #{tpu_custom_call.1} parent=31 // pred_region
          %s452 = ssub.s32 128, 128
          %453 = vsyncadd %s439, %s452
          %s454 = sadd.s32 %s31, %s30
          %s455 = smul.addr %s454, 128
          %s456 = scalar_lea.hbm %s3, %s455
          %s458 = sshll.u32 %s442, 4
          %s459 = int_to_ptr.vmem [resolvable:$true] %s458
          %461 = dma.vmem_to_hbm [thread:$0]  %s459, 128, %s456, %s439
        $region48: #{tpu_custom_call.1} parent=31 // pred_fallthru
          _
        // Predicated region
        $region49: #{tpu_custom_call.1} parent=31 // pred_check
          %p462 = pneg %p164
        $region50: #{tpu_custom_call.1} parent=31 // pred_check_branch
          %464 = sbr.rel (%p462) target = $region52
        $region51: #{tpu_custom_call.1} parent=31 // pred_region
          %s466 = ssub.s32 128, 128
          %467 = vsyncadd %s444, %s466
          %s468 = sadd.s32 %s31, %s30
          %s469 = smul.addr %s468, 128
          %s470 = scalar_lea.hbm %s4, %s469
          %s472 = sshll.u32 %s447, 4
          %s473 = int_to_ptr.vmem [resolvable:$true] %s472
          %475 = dma.vmem_to_hbm [thread:$0]  %s473, 128, %s470, %s444
        $region52: #{tpu_custom_call.1} parent=31 // pred_fallthru
          _
      $region32: #{tpu_custom_call.1} parent=5 // pred_fallthru
        _
      %p476 = scmp.le.s32.totalorder 2, %s21
      // Predicated region
      $region53: #{tpu_custom_call.1} parent=5 // pred_check
        %p477 = pneg %p476
      $region54: #{tpu_custom_call.1} parent=5 // pred_check_branch
        %479 = sbr.rel (%p477) target = $region56
      $region55: #{tpu_custom_call.1} parent=5 // pred_region
        %s480 = ssub.s32 %s21, 2
        // Predicated region
        $region57: #{tpu_custom_call.1} parent=55 // pred_check
          %p481 = pneg %p142
        $region58: #{tpu_custom_call.1} parent=55 // pred_check_branch
          %483 = sbr.rel (%p481) target = $region60
        $region59: #{tpu_custom_call.1} parent=55 // pred_region
          %s484 = sand.u32 %s127, 1
          %s485 = scalar_lea.sflag [#allocation4], %s484
          %s486 = sand.u32 %s127, 1
          %s487 = smul.addr %s486, 8
          %s488 = scalar_lea.vmem [#allocation8], %s487
          %489 = dma.done %s485, 128
        $region60: #{tpu_custom_call.1} parent=55 // pred_fallthru
          _
        // Predicated region
        $region61: #{tpu_custom_call.1} parent=55 // pred_check
          %p490 = pneg %p170
        $region62: #{tpu_custom_call.1} parent=55 // pred_check_branch
          %492 = sbr.rel (%p490) target = $region64
        $region63: #{tpu_custom_call.1} parent=55 // pred_region
          %s493 = sand.u32 %s155, 1
          %s494 = scalar_lea.sflag [#allocation10], %s493
          %s495 = sand.u32 %s155, 1
          %s496 = smul.addr %s495, 8
          %s497 = scalar_lea.vmem [#allocation9], %s496
          %498 = dma.done %s494, 128
        $region64: #{tpu_custom_call.1} parent=55 // pred_fallthru
          _
      $region56: #{tpu_custom_call.1} parent=5 // pred_fallthru
        _
    $region6: #{tpu_custom_call.1} parent=1 // loop_footer
      %s25 = sadd.s32 1, %s21
    $region7: #{tpu_custom_call.1} parent=1 // loop_footer_branch
      %20 = sbr.rel target = $region3
    $region8: #{tpu_custom_call.1} parent=1 // loop_exit
      _
    %499 = vsyncpa [#allocation3], 1
    %s500 = scalar_lea.sflag [#allocation3], 1
    %501 = vsyncpa %s500, 1
    %502 = vsyncpa [#allocation6], 1
    %503 = vsyncpa [#allocation4], 1
    %s504 = scalar_lea.sflag [#allocation4], 1
    %505 = vsyncpa %s504, 1
    %506 = vsyncpa [#allocation10], 1
    %s507 = scalar_lea.sflag [#allocation10], 1
    %508 = vsyncpa %s507, 1

// kernel: tpu_custom_call.1
$region0: #{tpu_custom_call.1}
  #allocation0 [shape = 'u32[]', space=smem, size = 0x4, offset = 0x4, fixed_abs, tag = 'smem constant byte address 0x4 - core index']
  #allocation1 [shape = 'u32[144,128]{1,0:T(1,128)}', space=vmem, size = 0x12000, scoped, tag = 'internal scratch']
  %s0 = inlined_call_operand.hbm [shape: f32[16,32], index: 0, kind: input, shape index: {}]
  %s1 = inlined_call_operand.hbm [shape: f32[32,32], index: 1, kind: input, shape index: {}]
  %s2 = inlined_call_operand.hbm [shape: f32[32,32], index: 2, kind: input, shape index: {}]
  %s3 = inlined_call_operand.hbm [shape: f32[16,32], index: 3, kind: output, shape index: {0}]
  %s4 = inlined_call_operand.hbm [shape: f32[16,32], index: 4, kind: output, shape index: {1}]
  %5 = xla_tuple %s3, %s4
  %s6 = sld [smem:[#allocation0]]
  $region65: #{tpu_custom_call.1} parent=0
    _
  %s8 = ssub.s32 1, %s6
  %s9 = scalar_select 0, %s8, %s6
  $region1: #{tpu_custom_call.1} parent=0
    #allocation2 [shape = 'u8[8192]{0}', space=vmem, size = 0x2000, scoped, tag = 'input window, operand 0']
    #allocation3 [shape = 's32[2]{0}', space=sflag, size = 0x8, scoped, tag = 'scoped memory for tpu_custom_call.1']
    #allocation4 [shape = 's32[2]{0}', space=sflag, size = 0x8, scoped, tag = 'scoped memory for tpu_custom_call.1']
    #allocation5 [shape = 'u8[16384]{0}', space=vmem, size = 0x4000, scoped, tag = 'input window, operand 1, single buffered']
    #allocation6 [shape = 's32[1]{0}', space=sflag, size = 0x4, scoped, tag = 'scoped memory for tpu_custom_call.1']
    #allocation7 [shape = 'u8[16384]{0}', space=vmem, size = 0x4000, scoped, tag = 'input window, operand 2, single buffered']
    #allocation8 [shape = 'u8[8192]{0}', space=vmem, size = 0x2000, scoped, tag = 'output window, operand 0']
    #allocation9 [shape = 'u8[8192]{0}', space=vmem, size = 0x2000, scoped, tag = 'output window, operand 1']
    #allocation10 [shape = 's32[2]{0}', space=sflag, size = 0x8, scoped, tag = 'scoped memory for tpu_custom_call.1']
    %10 = vsyncpa [#allocation3], 0
    %s11 = scalar_lea.sflag [#allocation3], 1
    %12 = vsyncpa %s11, 0
    %13 = vsyncpa [#allocation6], 0
    %14 = vsyncpa [#allocation4], 0
    %s15 = scalar_lea.sflag [#allocation4], 1
    %16 = vsyncpa %s15, 0
    %17 = vsyncpa [#allocation10], 0
    %s18 = scalar_lea.sflag [#allocation10], 1
    %19 = vsyncpa %s18, 0
    loop: start=0, step=1, limit=4
    $region2: #{tpu_custom_call.1} parent=1 // loop_pre_header
      _
    $region3: #{tpu_custom_call.1} parent=1 // loop_header
      %s21 = sphi 0, %s25
      %p22 = scmp.ge.s32.totalorder %s21, 4
      %s28 = sphi 0, %s40
      %s29 = sphi 0, %s36
      %s30 = sphi 0, %s28
      %s31 = sphi 0, %s29
      %s32 = sphi 0, %s30
      %s33 = sphi 0, %s31
      %s43 = sphi 0, %s45
      %s46 = sphi 0, %s43
      %s47 = sphi 0, %s46
      %s63 = sphi 0, %s47
      %s69 = sphi 0, %s71
      %s72 = sphi 0, %s69
      %s73 = sphi 0, %s72
      %s89 = sphi 0, %s73
      %s95 = sphi 0, %s97
      %s98 = sphi 0, %s95
      %s99 = sphi 0, %s98
      %s115 = sphi 0, %s99
      %s123 = sphi 0, %s125
      %s126 = sphi 0, %s123
      %s127 = sphi 0, %s126
      %s143 = sphi 0, %s127
      %s151 = sphi 0, %s153
      %s154 = sphi 0, %s151
      %s155 = sphi 0, %s154
      %s171 = sphi 0, %s155
    $region4: #{tpu_custom_call.1} parent=1 // loop_header_branch
      %24 = sbr.rel (%p22) target = $region8
    $region5: #{tpu_custom_call.1} parent=1 // loop_body
      %s26 = ssub.s32 %s21, 1
      %s27 = ssub.s32 %s21, 2
      %s34 = sadd.s32 1, %s29
      %p35 = scmp.ge.s32.totalorder %s34, 1
      %s36 = scalar_select %p35, 0, %s34
      %s37 = sadd.s32 1, %s28
      %s38 = scalar_select %p35, %s37, %s28
      %p39 = scmp.ge.s32.totalorder %s38, 2
      %s40 = scalar_select %p39, 0, %s38
      %s41 = ssub.s32 %s28, %s40
      %p42 = scmp.eq.s32.totalorder %s41, 0
      %s44 = sadd.s32 %s43, 1
      %s45 = scalar_select %p42, %s43, %s44
      %p48 = pneg %p42
      %p49 = scmp.eq.s32.totalorder %s21, 1
      %p50 = por %p48, %p49
      %p51 = scmp.ne.s32.totalorder %s43, %s46
      %p52 = scmp.eq.s32.totalorder %s21, 0
      %p53 = por %p51, %p52
      %p54 = scmp.ne.s32.totalorder %s43, %s46
      %p55 = scmp.eq.s32.totalorder %s26, 1
      %p56 = por %p54, %p55
      %p57 = scmp.ne.s32.totalorder %s46, %s47
      %p58 = scmp.eq.s32.totalorder %s26, 0
      %p59 = por %p57, %p58
      %p60 = scmp.ne.s32.totalorder %s46, %s47
      %p61 = scmp.eq.s32.totalorder %s27, 1
      %p62 = por %p60, %p61
      %p64 = scmp.ne.s32.totalorder %s47, %s63
      %p65 = scmp.eq.s32.totalorder %s27, 0
      %p66 = por %p64, %p65
      %s67 = ssub.s32 %s29, %s36
      %p68 = scmp.eq.s32.totalorder %s67, 0
      %s70 = sadd.s32 %s69, 1
      %s71 = scalar_select %p68, %s69, %s70
      %p74 = pneg %p68
      %p75 = scmp.eq.s32.totalorder %s21, 1
      %p76 = por %p74, %p75
      %p77 = scmp.ne.s32.totalorder %s69, %s72
      %p78 = scmp.eq.s32.totalorder %s21, 0
      %p79 = por %p77, %p78
      %p80 = scmp.ne.s32.totalorder %s69, %s72
      %p81 = scmp.eq.s32.totalorder %s26, 1
      %p82 = por %p80, %p81
      %p83 = scmp.ne.s32.totalorder %s72, %s73
      %p84 = scmp.eq.s32.totalorder %s26, 0
      %p85 = por %p83, %p84
      %p86 = scmp.ne.s32.totalorder %s72, %s73
      %p87 = scmp.eq.s32.totalorder %s27, 1
      %p88 = por %p86, %p87
      %p90 = scmp.ne.s32.totalorder %s73, %s89
      %p91 = scmp.eq.s32.totalorder %s27, 0
      %p92 = por %p90, %p91
      %s93 = ssub.s32 %s29, %s36
      %p94 = scmp.eq.s32.totalorder %s93, 0
      %s96 = sadd.s32 %s95, 1
      %s97 = scalar_select %p94, %s95, %s96
      %p100 = pneg %p94
      %p101 = scmp.eq.s32.totalorder %s21, 1
      %p102 = por %p100, %p101
      %p103 = scmp.ne.s32.totalorder %s95, %s98
      %p104 = scmp.eq.s32.totalorder %s21, 0
      %p105 = por %p103, %p104
      %p106 = scmp.ne.s32.totalorder %s95, %s98
      %p107 = scmp.eq.s32.totalorder %s26, 1
      %p108 = por %p106, %p107
      %p109 = scmp.ne.s32.totalorder %s98, %s99
      %p110 = scmp.eq.s32.totalorder %s26, 0
      %p111 = por %p109, %p110
      %p112 = scmp.ne.s32.totalorder %s98, %s99
      %p113 = scmp.eq.s32.totalorder %s27, 1
      %p114 = por %p112, %p113
      %p116 = scmp.ne.s32.totalorder %s99, %s115
      %p117 = scmp.eq.s32.totalorder %s27, 0
      %p118 = por %p116, %p117
      %s119 = ssub.s32 %s28, %s40
      %s120 = ssub.s32 %s29, %s36
      %s121 = sor.u32 %s119, %s120
      %p122 = scmp.eq.s32.totalorder %s121, 0
      %s124 = sadd.s32 %s123, 1
      %s125 = scalar_select %p122, %s123, %s124
      %p128 = pneg %p122
      %p129 = scmp.eq.s32.totalorder %s21, 1
      %p130 = por %p128, %p129
      %p131 = scmp.ne.s32.totalorder %s123, %s126
      %p132 = scmp.eq.s32.totalorder %s21, 0
      %p133 = por %p131, %p132
      %p134 = scmp.ne.s32.totalorder %s123, %s126
      %p135 = scmp.eq.s32.totalorder %s26, 1
      %p136 = por %p134, %p135
      %p137 = scmp.ne.s32.totalorder %s126, %s127
      %p138 = scmp.eq.s32.totalorder %s26, 0
      %p139 = por %p137, %p138
      %p140 = scmp.ne.s32.totalorder %s126, %s127
      %p141 = scmp.eq.s32.totalorder %s27, 1
      %p142 = por %p140, %p141
      %p144 = scmp.ne.s32.totalorder %s127, %s143
      %p145 = scmp.eq.s32.totalorder %s27, 0
      %p146 = por %p144, %p145
      %s147 = ssub.s32 %s28, %s40
      %s148 = ssub.s32 %s29, %s36
      %s149 = sor.u32 %s147, %s148
      %p150 = scmp.eq.s32.totalorder %s149, 0
      %s152 = sadd.s32 %s151, 1
      %s153 = scalar_select %p150, %s151, %s152
      %p156 = pneg %p150
      %p157 = scmp.eq.s32.totalorder %s21, 1
      %p158 = por %p156, %p157
      %p159 = scmp.ne.s32.totalorder %s151, %s154
      %p160 = scmp.eq.s32.totalorder %s21, 0
      %p161 = por %p159, %p160
      %p162 = scmp.ne.s32.totalorder %s151, %s154
      %p163 = scmp.eq.s32.totalorder %s26, 1
      %p164 = por %p162, %p163
      %p165 = scmp.ne.s32.totalorder %s154, %s155
      %p166 = scmp.eq.s32.totalorder %s26, 0
      %p167 = por %p165, %p166
      %p168 = scmp.ne.s32.totalorder %s154, %s155
      %p169 = scmp.eq.s32.totalorder %s27, 1
      %p170 = por %p168, %p169
      %p172 = scmp.ne.s32.totalorder %s155, %s171
      %p173 = scmp.eq.s32.totalorder %s27, 0
      %p174 = por %p172, %p173
      %p175 = scmp.le.s32.totalorder 1, %s21
      %p176 = scmp.lt.s32.totalorder %s21, 3
      %p177 = pnand %p175, %p176
      %p178 = pneg %p177
      // Predicated region
      $region9: #{tpu_custom_call.1} parent=5 // pred_check
        _
      $region10: #{tpu_custom_call.1} parent=5 // pred_check_branch
        %180 = sbr.rel (%p177) target = $region12
      $region11: #{tpu_custom_call.1} parent=5 // pred_region
        %s181 = ssub.s32 %s21, 1
        // Predicated region
        $region13: #{tpu_custom_call.1} parent=11 // pred_check
          %p182 = pneg %p85
        $region14: #{tpu_custom_call.1} parent=11 // pred_check_branch
          %184 = sbr.rel (%p182) target = $region16
        $region15: #{tpu_custom_call.1} parent=11 // pred_region
          %s186 = ssub.s32 512, 512
          %187 = vsyncadd [#allocation6], %s186
          %s188 = smul.addr %s31, 128
          %s189 = scalar_lea.hbm %s1, %s188
          %s190 = sshll.u32 [#allocation5], 4
          %s191 = int_to_ptr.vmem [resolvable:$true] %s190
          %196 = dma.hbm_to_vmem [thread:$0]  %s189, 512, %s191, [#allocation6], 128, 128, 8
        $region16: #{tpu_custom_call.1} parent=11 // pred_fallthru
          _
        // Predicated region
        $region17: #{tpu_custom_call.1} parent=11 // pred_check
          %p197 = pneg %p111
        $region18: #{tpu_custom_call.1} parent=11 // pred_check_branch
          %199 = sbr.rel (%p197) target = $region20
        $region19: #{tpu_custom_call.1} parent=11 // pred_region
          %s201 = ssub.s32 512, 512
          %202 = vsyncadd [#allocation6], %s201
          %s203 = smul.addr %s31, 128
          %s204 = scalar_lea.hbm %s2, %s203
          %s205 = sshll.u32 [#allocation7], 4
          %s206 = int_to_ptr.vmem [resolvable:$true] %s205
          %211 = dma.hbm_to_vmem [thread:$0]  %s204, 512, %s206, [#allocation6], 128, 128, 8
        $region20: #{tpu_custom_call.1} parent=11 // pred_fallthru
          _
      $region12: #{tpu_custom_call.1} parent=5 // pred_fallthru
        _
      %p212 = scmp.lt.s32.totalorder %s21, 2
      // Predicated region
      $region21: #{tpu_custom_call.1} parent=5 // pred_check
        %p213 = pneg %p212
      $region22: #{tpu_custom_call.1} parent=5 // pred_check_branch
        %215 = sbr.rel (%p213) target = $region24
      $region23: #{tpu_custom_call.1} parent=5 // pred_region
        // Predicated region
        $region25: #{tpu_custom_call.1} parent=23 // pred_check
          %p216 = pneg %p53
        $region26: #{tpu_custom_call.1} parent=23 // pred_check_branch
          %218 = sbr.rel (%p216) target = $region28
        $region27: #{tpu_custom_call.1} parent=23 // pred_region
          %s219 = sand.u32 %s43, 1
          %s220 = scalar_lea.sflag [#allocation3], %s219
          %s221 = sand.u32 %s43, 1
          %s222 = smul.addr %s221, 8
          %s223 = scalar_lea.vmem [#allocation2], %s222
          %s225 = ssub.s32 128, 128
          %226 = vsyncadd %s220, %s225
          %s227 = smul.addr %s28, 128
          %s228 = scalar_lea.hbm %s0, %s227
          %s230 = sshll.u32 %s223, 4
          %s231 = int_to_ptr.vmem [resolvable:$true] %s230
          %233 = dma.hbm_to_vmem [thread:$0]  %s228, 128, %s231, %s220
        $region28: #{tpu_custom_call.1} parent=23 // pred_fallthru
          _
      $region24: #{tpu_custom_call.1} parent=5 // pred_fallthru
        _
      %p234 = scmp.le.s32.totalorder 1, %s21
      %p235 = scmp.lt.s32.totalorder %s21, 3
      %p236 = pnand %p234, %p235
      %p237 = pneg %p236
      // Predicated region
      $region29: #{tpu_custom_call.1} parent=5 // pred_check
        _
      $region30: #{tpu_custom_call.1} parent=5 // pred_check_branch
        %239 = sbr.rel (%p236) target = $region32
      $region31: #{tpu_custom_call.1} parent=5 // pred_region
        %s240 = ssub.s32 %s21, 1
        %s241 = sand.u32 %s46, 1
        %s242 = scalar_lea.sflag [#allocation3], %s241
        %s243 = sand.u32 %s46, 1
        %s244 = smul.addr %s243, 8
        %s245 = scalar_lea.vmem [#allocation2], %s244
        // Predicated region
        $region33: #{tpu_custom_call.1} parent=31 // pred_check
          %p246 = pneg %p59
        $region34: #{tpu_custom_call.1} parent=31 // pred_check_branch
          %248 = sbr.rel (%p246) target = $region36
        $region35: #{tpu_custom_call.1} parent=31 // pred_region
          %249 = dma.done %s242, 128
        $region36: #{tpu_custom_call.1} parent=31 // pred_fallthru
          _
        // Predicated region
        $region37: #{tpu_custom_call.1} parent=31 // pred_check
          %p250 = pneg %p85
        $region38: #{tpu_custom_call.1} parent=31 // pred_check_branch
          %252 = sbr.rel (%p250) target = $region40
        $region39: #{tpu_custom_call.1} parent=31 // pred_region
          %253 = dma.done [#allocation6], 512
        $region40: #{tpu_custom_call.1} parent=31 // pred_fallthru
          _
        // Predicated region
        $region41: #{tpu_custom_call.1} parent=31 // pred_check
          %p254 = pneg %p111
        $region42: #{tpu_custom_call.1} parent=31 // pred_check_branch
          %256 = sbr.rel (%p254) target = $region44
        $region43: #{tpu_custom_call.1} parent=31 // pred_region
          %257 = dma.done [#allocation6], 512
        $region44: #{tpu_custom_call.1} parent=31 // pred_fallthru
          _
        %s258 = sand.u32 %s46, 1
        %s259 = scalar_lea.sflag [#allocation3], %s258
        %s260 = sand.u32 %s46, 1
        %s261 = smul.addr %s260, 8
        %s262 = scalar_lea.vmem [#allocation2], %s261
        %p263 = pneg %p59
        %p264 = pneg %p56
        %p265 = pneg %p85
        %p266 = pneg %p82
        %p267 = pneg %p111
        %p268 = pneg %p108
        %p269 = pneg %p139
        %p270 = pneg %p136
        %s271 = sand.u32 %s126, 1
        %s272 = scalar_lea.sflag [#allocation4], %s271
        %s273 = sand.u32 %s126, 1
        %s274 = smul.addr %s273, 8
        %s275 = scalar_lea.vmem [#allocation8], %s274
        %p276 = pneg %p167
        %p277 = pneg %p164
        %s278 = sand.u32 %s154, 1
        %s279 = scalar_lea.sflag [#allocation10], %s278
        %s280 = sand.u32 %s154, 1
        %s281 = smul.addr %s280, 8
        %s282 = scalar_lea.vmem [#allocation9], %s281
        %v283 = vld [vmem:[%s245] sm:$0xff]
        %v284 = vld [vmem:[#allocation5] sm:$0xff]
        %v285 = vld [vmem:[#allocation5 + $0x8] sm:$0xff]
        %v286 = vld [vmem:[#allocation5 + $0x10] sm:$0xff]
        %v287 = vld [vmem:[#allocation5 + $0x18] sm:$0xff]
        %vm288 = vcmask 261120
        %v290 = vsel %vm288, %v283, 0
        %292 = vmatprep.subr.mxu0 0.0
        %293 = vmatpush1.msra.mxu0 %v284
        %294 = vmatprep.subr.mxu0 0.0
        %295 = vmatpush1.msra.mxu0 %v285
        %296 = vmatprep.subr.mxu0 0.0
        %297 = vmatpush1.msra.mxu0 %v286
        %298 = vmatprep.subr.mxu0 0.0
        %299 = vmatpush1.msra.mxu0 %v287
        %300 = vmatprep.subr.mxu0 0.0
        %301 = vmatpush1.msra.mxu0 0.0
        %302 = vmatprep.subr.mxu0 0.0
        %303 = vmatpush1.msra.mxu0 0.0
        %304 = vmatprep.subr.mxu0 0.0
        %305 = vmatpush1.msra.mxu0 0.0
        %306 = vmatprep.subr.mxu0 0.0
        %307 = vmatpush1.msra.mxu0 0.0
        %308 = vmatprep.subr.mxu0 0.0
        %309 = vmatpush1.msra.mxu0 0.0
        %310 = vmatprep.subr.mxu0 0.0
        %311 = vmatpush1.msra.mxu0 0.0
        %312 = vmatprep.subr.mxu0 0.0
        %313 = vmatpush1.msra.mxu0 0.0
        %314 = vmatprep.subr.mxu0 0.0
        %315 = vmatpush1.msra.mxu0 0.0
        %316 = vmatprep.subr.mxu0 0.0
        %317 = vmatpush1.msra.mxu0 0.0
        %318 = vmatprep.subr.mxu0 0.0
        %319 = vmatpush1.msra.mxu0 0.0
        %320 = vmatprep.subr.mxu0 0.0
        %321 = vmatpush1.msra.mxu0 0.0
        %322 = vmatprep.subr.mxu0 0.0
        %323 = vmatpush1.msra.mxu0 0.0
        %324 = vmatprep.subr.mxu0 0.0
        %325 = vmatpush1.msra.mxu0 0.0
        %326 = vmatprep.subr.mxu0 0.0
        %327 = vmatpush1.msra.mxu0 0.0
        %328 = vmatprep.subr.mxu0 0.0
        %329 = vmatpush1.msra.mxu0 0.0
        %330 = vmatprep.subr.mxu0 0.0
        %331 = vmatpush1.msra.mxu0 0.0
        %332 = vmatprep.subr.mxu0 0.0
        %333 = vmatpush1.msra.mxu0 0.0
        %334 = vmatprep.subr.mxu0 0.0
        %335 = vmatpush1.msra.mxu0 0.0
        %336 = vmatprep.subr.mxu0 0.0
        %337 = vmatpush1.msra.mxu0 0.0
        %338 = vmatprep.subr.mxu0 0.0
        %339 = vmatpush1.msra.mxu0 0.0
        %340 = vmatprep.subr.mxu0 0.0
        %341 = vmatpush1.msra.mxu0 0.0
        %342 = vmatprep.subr.mxu0 0.0
        %343 = vmatpush1.msra.mxu0 0.0
        %344 = vmatprep.subr.mxu0 0.0
        %345 = vmatpush1.msra.mxu0 0.0
        %346 = vmatprep.subr.mxu0 0.0
        %347 = vmatpush1.msra.mxu0 0.0
        %348 = vmatprep.subr.mxu0 0.0
        %349 = vmatpush1.msra.mxu0 0.0
        %350 = vmatprep.subr.mxu0 0.0
        %351 = vmatpush1.msra.mxu0 0.0
        %352 = vmatprep.subr.mxu0 0.0
        %353 = vmatpush1.msra.mxu0 0.0
        %354 = vmatprep.subr.mxu0 0.0
        %355 = vmatpush1.msra.mxu0 0.0
        %356 = vmatprep.mubr.f32.mxu0 0.0
        %357 = vmatmul.mubr.f32.gmra.mrb[0].mxu0 %v290
        %v358 = vpop.f32.mrb[0].mxu0
        %v359 = vadd.f32 0.0, %v358
        %v360 = vpop.f32.mrb[0].mxu0
        %361 = vdwg.mxu0
        %362 = vst.msk [vmem:[%s275] sm:$0xff] %vm288, %v359
        %v363 = vld [vmem:[#allocation7] sm:$0xff]
        %v364 = vld [vmem:[#allocation7 + $0x8] sm:$0xff]
        %v365 = vld [vmem:[#allocation7 + $0x10] sm:$0xff]
        %v366 = vld [vmem:[#allocation7 + $0x18] sm:$0xff]
        %367 = vmatprep.subr.mxu0 0.0
        %368 = vmatpush1.msra.mxu0 %v363
        %369 = vmatprep.subr.mxu0 0.0
        %370 = vmatpush1.msra.mxu0 %v364
        %371 = vmatprep.subr.mxu0 0.0
        %372 = vmatpush1.msra.mxu0 %v365
        %373 = vmatprep.subr.mxu0 0.0
        %374 = vmatpush1.msra.mxu0 %v366
        %375 = vmatprep.subr.mxu0 0.0
        %376 = vmatpush1.msra.mxu0 0.0
        %377 = vmatprep.subr.mxu0 0.0
        %378 = vmatpush1.msra.mxu0 0.0
        %379 = vmatprep.subr.mxu0 0.0
        %380 = vmatpush1.msra.mxu0 0.0
        %381 = vmatprep.subr.mxu0 0.0
        %382 = vmatpush1.msra.mxu0 0.0
        %383 = vmatprep.subr.mxu0 0.0
        %384 = vmatpush1.msra.mxu0 0.0
        %385 = vmatprep.subr.mxu0 0.0
        %386 = vmatpush1.msra.mxu0 0.0
        %387 = vmatprep.subr.mxu0 0.0
        %388 = vmatpush1.msra.mxu0 0.0
        %389 = vmatprep.subr.mxu0 0.0
        %390 = vmatpush1.msra.mxu0 0.0
        %391 = vmatprep.subr.mxu0 0.0
        %392 = vmatpush1.msra.mxu0 0.0
        %393 = vmatprep.subr.mxu0 0.0
        %394 = vmatpush1.msra.mxu0 0.0
        %395 = vmatprep.subr.mxu0 0.0
        %396 = vmatpush1.msra.mxu0 0.0
        %397 = vmatprep.subr.mxu0 0.0
        %398 = vmatpush1.msra.mxu0 0.0
        %399 = vmatprep.subr.mxu0 0.0
        %400 = vmatpush1.msra.mxu0 0.0
        %401 = vmatprep.subr.mxu0 0.0
        %402 = vmatpush1.msra.mxu0 0.0
        %403 = vmatprep.subr.mxu0 0.0
        %404 = vmatpush1.msra.mxu0 0.0
        %405 = vmatprep.subr.mxu0 0.0
        %406 = vmatpush1.msra.mxu0 0.0
        %407 = vmatprep.subr.mxu0 0.0
        %408 = vmatpush1.msra.mxu0 0.0
        %409 = vmatprep.subr.mxu0 0.0
        %410 = vmatpush1.msra.mxu0 0.0
        %411 = vmatprep.subr.mxu0 0.0
        %412 = vmatpush1.msra.mxu0 0.0
        %413 = vmatprep.subr.mxu0 0.0
        %414 = vmatpush1.msra.mxu0 0.0
        %415 = vmatprep.subr.mxu0 0.0
        %416 = vmatpush1.msra.mxu0 0.0
        %417 = vmatprep.subr.mxu0 0.0
        %418 = vmatpush1.msra.mxu0 0.0
        %419 = vmatprep.subr.mxu0 0.0
        %420 = vmatpush1.msra.mxu0 0.0
        %421 = vmatprep.subr.mxu0 0.0
        %422 = vmatpush1.msra.mxu0 0.0
        %423 = vmatprep.subr.mxu0 0.0
        %424 = vmatpush1.msra.mxu0 0.0
        %425 = vmatprep.subr.mxu0 0.0
        %426 = vmatpush1.msra.mxu0 0.0
        %427 = vmatprep.subr.mxu0 0.0
        %428 = vmatpush1.msra.mxu0 0.0
        %429 = vmatprep.subr.mxu0 0.0
        %430 = vmatpush1.msra.mxu0 0.0
        %431 = vmatprep.mubr.f32.mxu0 0.0
        %432 = vmatmul.mubr.f32.gmra.mrb[0].mxu0 %v290
        %v433 = vpop.f32.mrb[0].mxu0
        %v434 = vadd.f32 0.0, %v433
        %v435 = vpop.f32.mrb[0].mxu0
        %436 = vdwg.mxu0
        %437 = vst.msk [vmem:[%s282] sm:$0xff] %vm288, %v434
        %s438 = sand.u32 %s126, 1
        %s439 = scalar_lea.sflag [#allocation4], %s438
        %s440 = sand.u32 %s126, 1
        %s441 = smul.addr %s440, 8
        %s442 = scalar_lea.vmem [#allocation8], %s441
        %s443 = sand.u32 %s154, 1
        %s444 = scalar_lea.sflag [#allocation10], %s443
        %s445 = sand.u32 %s154, 1
        %s446 = smul.addr %s445, 8
        %s447 = scalar_lea.vmem [#allocation9], %s446
        // Predicated region
        $region45: #{tpu_custom_call.1} parent=31 // pred_check
          %p448 = pneg %p136
        $region46: #{tpu_custom_call.1} parent=31 // pred_check_branch
          %450 = sbr.rel (%p448) target = $region48
        $region47: #{tpu_custom_call.1} parent=31 // pred_region
          %s452 = ssub.s32 128, 128
          %453 = vsyncadd %s439, %s452
          %s454 = sadd.s32 %s31, %s30
          %s455 = smul.addr %s454, 128
          %s456 = scalar_lea.hbm %s3, %s455
          %s458 = sshll.u32 %s442, 4
          %s459 = int_to_ptr.vmem [resolvable:$true] %s458
          %461 = dma.vmem_to_hbm [thread:$0]  %s459, 128, %s456, %s439
        $region48: #{tpu_custom_call.1} parent=31 // pred_fallthru
          _
        // Predicated region
        $region49: #{tpu_custom_call.1} parent=31 // pred_check
          %p462 = pneg %p164
        $region50: #{tpu_custom_call.1} parent=31 // pred_check_branch
          %464 = sbr.rel (%p462) target = $region52
        $region51: #{tpu_custom_call.1} parent=31 // pred_region
          %s466 = ssub.s32 128, 128
          %467 = vsyncadd %s444, %s466
          %s468 = sadd.s32 %s31, %s30
          %s469 = smul.addr %s468, 128
          %s470 = scalar_lea.hbm %s4, %s469
          %s472 = sshll.u32 %s447, 4
          %s473 = int_to_ptr.vmem [resolvable:$true] %s472
          %475 = dma.vmem_to_hbm [thread:$0]  %s473, 128, %s470, %s444
        $region52: #{tpu_custom_call.1} parent=31 // pred_fallthru
          _
      $region32: #{tpu_custom_call.1} parent=5 // pred_fallthru
        _
      %p476 = scmp.le.s32.totalorder 2, %s21
      // Predicated region
      $region53: #{tpu_custom_call.1} parent=5 // pred_check
        %p477 = pneg %p476
      $region54: #{tpu_custom_call.1} parent=5 // pred_check_branch
        %479 = sbr.rel (%p477) target = $region56
      $region55: #{tpu_custom_call.1} parent=5 // pred_region
        %s480 = ssub.s32 %s21, 2
        // Predicated region
        $region57: #{tpu_custom_call.1} parent=55 // pred_check
          %p481 = pneg %p142
        $region58: #{tpu_custom_call.1} parent=55 // pred_check_branch
          %483 = sbr.rel (%p481) target = $region60
        $region59: #{tpu_custom_call.1} parent=55 // pred_region
          %s484 = sand.u32 %s127, 1
          %s485 = scalar_lea.sflag [#allocation4], %s484
          %s486 = sand.u32 %s127, 1
          %s487 = smul.addr %s486, 8
          %s488 = scalar_lea.vmem [#allocation8], %s487
          %489 = dma.done %s485, 128
        $region60: #{tpu_custom_call.1} parent=55 // pred_fallthru
          _
        // Predicated region
        $region61: #{tpu_custom_call.1} parent=55 // pred_check
          %p490 = pneg %p170
        $region62: #{tpu_custom_call.1} parent=55 // pred_check_branch
          %492 = sbr.rel (%p490) target = $region64
        $region63: #{tpu_custom_call.1} parent=55 // pred_region
          %s493 = sand.u32 %s155, 1
          %s494 = scalar_lea.sflag [#allocation10], %s493
          %s495 = sand.u32 %s155, 1
          %s496 = smul.addr %s495, 8
          %s497 = scalar_lea.vmem [#allocation9], %s496
          %498 = dma.done %s494, 128
        $region64: #{tpu_custom_call.1} parent=55 // pred_fallthru
          _
      $region56: #{tpu_custom_call.1} parent=5 // pred_fallthru
        _
    $region6: #{tpu_custom_call.1} parent=1 // loop_footer
      %s25 = sadd.s32 1, %s21
    $region7: #{tpu_custom_call.1} parent=1 // loop_footer_branch
      %20 = sbr.rel target = $region3
    $region8: #{tpu_custom_call.1} parent=1 // loop_exit
      _
    %499 = vsyncpa [#allocation3], 1
    %s500 = scalar_lea.sflag [#allocation3], 1
    %501 = vsyncpa %s500, 1
    %502 = vsyncpa [#allocation6], 1
    %503 = vsyncpa [#allocation4], 1
    %s504 = scalar_lea.sflag [#allocation4], 1
    %505 = vsyncpa %s504, 1
    %506 = vsyncpa [#allocation10], 1
    %s507 = scalar_lea.sflag [#allocation10], 1
    %508 = vsyncpa %s507, 1

</llo_original>
